<compile_context>
chip_gen: v6e
topology: v6e:2x2x1
jax: 0.10.0
libtpu: 0.0.40
codegen_flags: <defaults>
</compile_context>

<pallas_src>
import jax
import jax.numpy as jnp
from jax.experimental import pallas as pl
from jax.experimental.pallas import tpu as pltpu


def _image_token_kernel(x_ref, m_ref, p_ref, o_ref):
    # x_ref: VMEM (TB, TF)  batch/feature tile
    # m_ref: VMEM (TB, 1)   0/1 mask column (same dtype as x)
    # p_ref: VMEM (1,  TF)  parameter row slice
    # o_ref: VMEM (TB, TF)  output tile
    o_ref[...] = x_ref[...] + m_ref[...] * p_ref[...]


def _round_up(n, m):
    return ((n + m - 1) // m) * m


def _sublane_multiple(dtype):
    # Native sublane tile: 8 for 4-byte, 16 for 2-byte, 32 for 1-byte dtypes.
    return max(8, 32 // jnp.dtype(dtype).itemsize)


def image_token_forward(x, mask, param, *, block_budget_bytes=None):
    """x: (B, C, S, S) float, mask: (B,) bool, param: (1, C, S, S) float."""
    B, C, S, S2 = x.shape
    assert S == S2 and param.shape == (1, C, S, S)
    dtype = x.dtype
    itemsize = jnp.dtype(dtype).itemsize
    sub = _sublane_multiple(dtype)

    F = C * S * S

    # ---- generation-aware sizing -------------------------------------------
    try:
        vmem_cap = int(pltpu.get_tpu_info().vmem_capacity_bytes)
    except Exception:
        vmem_cap = 128 << 20
    if block_budget_bytes is None:
        # v7x (64 MiB VMEM, ~3.2 TB/s HBM) wants bigger blocks to amortize the
        # fixed ~0.35 us per-grid-step overhead; v5e/v6e plateau around 4 MiB.
        block_budget_bytes = (8 << 20) if vmem_cap <= (64 << 20) else (4 << 20)

    # ---- feature tile TF ----------------------------------------------------
    # Keep the full row when a `sub`-row slab of it fits the budget; otherwise
    # tile the feature axis in 128-lane multiples (boundary block is clipped by
    # Pallas), balancing block sizes so the last block isn't mostly empty.
    if F * itemsize * sub <= block_budget_bytes:
        tf = F                       # full array dim -> always a legal block dim
    else:
        target_rows = 4 * sub        # keep param/mask VMEM overhead small
        tf_max = max(128, (block_budget_bytes // (target_rows * itemsize) // 128) * 128)
        tf = _round_up(pl.cdiv(F, pl.cdiv(F, tf_max)), 128)
    nf = pl.cdiv(F, tf)

    # ---- batch tile TB (dtype-aware sublane multiple, no tiny 256 cap) -----
    tb = (block_budget_bytes // (tf * itemsize) // sub) * sub
    tb = min(max(tb, sub), 2048)
    tb = min(tb, _round_up(B, sub))          # don't over-allocate tiny batches
    nb = pl.cdiv(B, tb)

    # Keep >= 2 parallel grid steps when possible so v7x's two TensorCores
    # both get work and DMA/compute overlap survives for small shapes.
    if nb * nf == 1 and B > sub:
        tb = _round_up(pl.cdiv(B, 2), sub)
        nb = pl.cdiv(B, tb)

    grid = (nb, nf)

    # ---- flatten (free reshapes; no pads, no output slice) ------------------
    x_flat = x.reshape(B, F)
    p_flat = param.reshape(1, F)
    m_col = mask.astype(dtype).reshape(B, 1)     # exact 0.0 / 1.0

    # ---- VMEM budget (conservative, incl. lane/sublane padding) -------------
    x_block = tb * tf * itemsize
    mask_block = tb * 128 * itemsize             # (tb,1) lane-pads to 128
    param_block = 8 * tf * itemsize              # (1,tf) sublane-pads to 8
    param_resident = (nf == 1)                   # constant index map
    param_bufs = 1 if param_resident else 2
    needed = 2 * (2 * x_block + mask_block) + param_bufs * param_block
    vmem_limit = needed + (2 << 20)              # headroom for Mosaic scratch
    vmem_limit = min(vmem_limit, max(vmem_cap - (16 << 20), needed + (1 << 20)))
    vmem_limit = int(max(vmem_limit, 4 << 20))

    def _build(single_buffer_param):
        if single_buffer_param:
            p_spec = pl.BlockSpec((1, tf), lambda b, f: (0, f),
                                  pipeline_mode=pl.Buffered(1))
        else:
            p_spec = pl.BlockSpec((1, tf), lambda b, f: (0, f))
        return pl.pallas_call(
            _image_token_kernel,
            out_shape=jax.ShapeDtypeStruct((B, F), dtype),
            grid=grid,
            in_specs=[
                pl.BlockSpec((tb, tf), lambda b, f: (b, f)),   # x tile
                pl.BlockSpec((tb, 1), lambda b, f: (b, 0)),    # mask column
                p_spec,                                        # param row slice
            ],
            out_specs=pl.BlockSpec((tb, tf), lambda b, f: (b, f)),
            compiler_params=pltpu.CompilerParams(
                dimension_semantics=("parallel", "parallel"),
                vmem_limit_bytes=vmem_limit,
            ),
        )

    if param_resident:
        try:
            out_flat = _build(True)(x_flat, m_col, p_flat)
        except Exception:
            # pipeline_mode / Buffered(1) unsupported -> default double-buffering.
            out_flat = _build(False)(x_flat, m_col, p_flat)
    else:
        out_flat = _build(False)(x_flat, m_col, p_flat)

    return out_flat.reshape(B, C, S, S)


if __name__ == "__main__":
    key = jax.random.PRNGKey(0)
    k_x, k_p, k_m = jax.random.split(key, 3)

    size = 16          # ImageToken(size=16), small-shape variant
    B, C = 2, 3
    x = jax.random.normal(k_x, (B, C, size, size), dtype=jnp.float32)
    # nn.Parameter(torch.randn(1,3,size,size).normal_(0, 0.001))
    param = 0.001 * jax.random.normal(k_p, (1, C, size, size), dtype=jnp.float32)
    mask = jax.random.bernoulli(k_m, p=0.5, shape=(B,))

    out = image_token_forward(x, mask, param)
    out = jax.block_until_ready(out)

    # reference check in plain JAX (torch.where semantics)
    ref = jnp.where(mask.reshape(B, 1, 1, 1), x + param, x)
    assert out.shape == (B, C, size, size)
    assert jnp.allclose(out, ref, atol=1e-6), "mismatch vs reference"

    print("KERNEL_OK")
</pallas_src>

<mosaic_0001>
module attributes {stable_mosaic.version = 11 : i64} {
  func.func @_image_token_kernel(%arg0: i32, %arg1: i32, %arg2: memref<8x768xf32, #tpu.memory_space<vmem>>, %arg3: memref<8x1xf32, #tpu.memory_space<vmem>>, %arg4: memref<1x768xf32, #tpu.memory_space<vmem>>, %arg5: memref<8x768xf32, #tpu.memory_space<vmem>>) attributes {dimension_semantics = [#tpu.dimension_semantics<parallel>, #tpu.dimension_semantics<parallel>], iteration_bounds = array<i64: 1, 1>, scalar_prefetch = 0 : i64, scratch_operands = 0 : i64, tpu.core_type = #tpu.core_type<tc>, window_params = [{transform_indices = @transform_0, window_bounds = array<i64: 8, 768>}, {transform_indices = @transform_1, window_bounds = array<i64: 8, 1>}, {pipeline_mode = #tpu.pipeline_mode<synchronous>, transform_indices = @transform_2, window_bounds = array<i64: 1, 768>}, {transform_indices = @transform_3, window_bounds = array<i64: 8, 768>}]} {
    %c0 = arith.constant 0 : index
    %c0_0 = arith.constant 0 : index
    %0 = vector.load %arg2[%c0, %c0_0] : memref<8x768xf32, #tpu.memory_space<vmem>>, vector<8x768xf32>
    %c0_1 = arith.constant 0 : index
    %c0_2 = arith.constant 0 : index
    %1 = vector.load %arg3[%c0_1, %c0_2] : memref<8x1xf32, #tpu.memory_space<vmem>>, vector<8x1xf32>
    %c0_3 = arith.constant 0 : index
    %c0_4 = arith.constant 0 : index
    %2 = vector.load %arg4[%c0_3, %c0_4] : memref<1x768xf32, #tpu.memory_space<vmem>>, vector<1x768xf32>
    %3 = vector.broadcast %1 : vector<8x1xf32> to vector<8x768xf32>
    %4 = vector.broadcast %2 : vector<1x768xf32> to vector<8x768xf32>
    %5 = arith.mulf %3, %4 : vector<8x768xf32>
    %6 = arith.addf %0, %5 : vector<8x768xf32>
    %c0_5 = arith.constant 0 : index
    %c0_6 = arith.constant 0 : index
    %7 = vector.load %arg5[%c0_5, %c0_6] : memref<8x768xf32, #tpu.memory_space<vmem>>, vector<8x768xf32>
    tpu.vector_store %arg5[%c0_5, %c0_6], %6 {strides = array<i32>} : memref<8x768xf32, #tpu.memory_space<vmem>>, vector<8x768xf32>,
    return
  }
  func.func @transform_0(%arg0: i32, %arg1: i32) -> (i32, i32) {
    %c0_i32 = arith.constant 0 : i32
    return %arg0, %arg1 : i32, i32
  }
  func.func @transform_1(%arg0: i32, %arg1: i32) -> (i32, i32) {
    %c0_i32 = arith.constant 0 : i32
    %c0_i32_0 = arith.constant 0 : i32
    return %arg0, %c0_i32 : i32, i32
  }
  func.func @transform_2(%arg0: i32, %arg1: i32) -> (i32, i32) {
    %c0_i32 = arith.constant 0 : i32
    %c0_i32_0 = arith.constant 0 : i32
    return %c0_i32, %arg1 : i32, i32
  }
  func.func @transform_3(%arg0: i32, %arg1: i32) -> (i32, i32) {
    %c0_i32 = arith.constant 0 : i32
    return %arg0, %arg1 : i32, i32
  }
}

module attributes {stable_mosaic.version = 11 : i64} {
  func.func @_image_token_kernel(%arg0: i32, %arg1: i32, %arg2: memref<8x768xf32, #tpu.memory_space<vmem>>, %arg3: memref<8x1xf32, #tpu.memory_space<vmem>>, %arg4: memref<1x768xf32, #tpu.memory_space<vmem>>, %arg5: memref<8x768xf32, #tpu.memory_space<vmem>>) attributes {dimension_semantics = [#tpu.dimension_semantics<parallel>, #tpu.dimension_semantics<parallel>], iteration_bounds = array<i64: 1, 1>, scalar_prefetch = 0 : i64, scratch_operands = 0 : i64, tpu.core_type = #tpu.core_type<tc>, window_params = [{transform_indices = @transform_0, window_bounds = array<i64: 8, 768>}, {transform_indices = @transform_1, window_bounds = array<i64: 8, 1>}, {transform_indices = @transform_2, window_bounds = array<i64: 1, 768>}, {transform_indices = @transform_3, window_bounds = array<i64: 8, 768>}]} {
    %c0 = arith.constant 0 : index
    %c0_0 = arith.constant 0 : index
    %0 = vector.load %arg2[%c0, %c0_0] : memref<8x768xf32, #tpu.memory_space<vmem>>, vector<8x768xf32>
    %c0_1 = arith.constant 0 : index
    %c0_2 = arith.constant 0 : index
    %1 = vector.load %arg3[%c0_1, %c0_2] : memref<8x1xf32, #tpu.memory_space<vmem>>, vector<8x1xf32>
    %c0_3 = arith.constant 0 : index
    %c0_4 = arith.constant 0 : index
    %2 = vector.load %arg4[%c0_3, %c0_4] : memref<1x768xf32, #tpu.memory_space<vmem>>, vector<1x768xf32>
    %3 = vector.broadcast %1 : vector<8x1xf32> to vector<8x768xf32>
    %4 = vector.broadcast %2 : vector<1x768xf32> to vector<8x768xf32>
    %5 = arith.mulf %3, %4 : vector<8x768xf32>
    %6 = arith.addf %0, %5 : vector<8x768xf32>
    %c0_5 = arith.constant 0 : index
    %c0_6 = arith.constant 0 : index
    %7 = vector.load %arg5[%c0_5, %c0_6] : memref<8x768xf32, #tpu.memory_space<vmem>>, vector<8x768xf32>
    tpu.vector_store %arg5[%c0_5, %c0_6], %6 {strides = array<i32>} : memref<8x768xf32, #tpu.memory_space<vmem>>, vector<8x768xf32>,
    return
  }
  func.func @transform_0(%arg0: i32, %arg1: i32) -> (i32, i32) {
    %c0_i32 = arith.constant 0 : i32
    return %arg0, %arg1 : i32, i32
  }
  func.func @transform_1(%arg0: i32, %arg1: i32) -> (i32, i32) {
    %c0_i32 = arith.constant 0 : i32
    %c0_i32_0 = arith.constant 0 : i32
    return %arg0, %c0_i32 : i32, i32
  }
  func.func @transform_2(%arg0: i32, %arg1: i32) -> (i32, i32) {
    %c0_i32 = arith.constant 0 : i32
    %c0_i32_0 = arith.constant 0 : i32
    return %c0_i32, %arg1 : i32, i32
  }
  func.func @transform_3(%arg0: i32, %arg1: i32) -> (i32, i32) {
    %c0_i32 = arith.constant 0 : i32
    return %arg0, %arg1 : i32, i32
  }
}

</mosaic_0001>

<llo_original>
// kernel: tpu_custom_call.1
$region0: #{tpu_custom_call.1}
  #allocation0 [shape = 'u32[]', space=smem, size = 0x4, offset = 0x4, fixed_abs, tag = 'smem constant byte address 0x4 - core index']
  #allocation1 [shape = 'u32[144,128]{1,0:T(1,128)}', space=vmem, size = 0x12000, scoped, tag = 'internal scratch']
  %s0 = inlined_call_operand.hbm [shape: f32[2,768], index: 0, kind: input, shape index: {}]
  %s1 = inlined_call_operand.vmem [shape: f32[2,1], index: 1, kind: input, shape index: {}]
  %s2 = inlined_call_operand.vmem [shape: f32[1,768], index: 2, kind: input, shape index: {}]
  %s3 = inlined_call_operand.hbm [shape: f32[2,768], index: 3, kind: output, shape index: {}]
  %s4 = sld [smem:[#allocation0]]
  $region26: #{tpu_custom_call.1} parent=0
    _
  %s6 = ssub.s32 1, %s4
  %s7 = scalar_select 0, %s6, %s4
  $region1: #{tpu_custom_call.1} parent=0
    #allocation2 [shape = 'u8[24576]{0}', space=vmem, size = 0x6000, scoped, tag = 'input window, operand 0, single buffered']
    #allocation3 [shape = 's32[1]{0}', space=sflag, size = 0x4, scoped, tag = 'scoped memory for tpu_custom_call.1']
    #allocation4 [shape = 's32[1]{0}', space=sflag, size = 0x4, scoped, tag = 'scoped memory for tpu_custom_call.1']
    #allocation5 [shape = 'u8[24576]{0}', space=vmem, size = 0x6000, scoped, tag = 'output window, operand 0, single buffered']
    %8 = vsyncpa [#allocation3], 0
    %9 = vsyncpa [#allocation4], 0
    // Predicated region
    $region2: #{tpu_custom_call.1} parent=1 // pred_check
      _
    $region3: #{tpu_custom_call.1} parent=1 // pred_check_branch
      %11 = sbr.rel (0) target = $region5
    $region4: #{tpu_custom_call.1} parent=1 // pred_region
      %s13 = ssub.s32 768, 192
      %14 = vsyncadd [#allocation3], %s13
      %s15 = sshll.u32 [#allocation2], 4
      %s16 = int_to_ptr.vmem [resolvable:$true] %s15
      %21 = dma.hbm_to_vmem [thread:$0]  %s0, 192, %s16, [#allocation3], 192, 192, 12
    $region5: #{tpu_custom_call.1} parent=1 // pred_fallthru
      _
    // Predicated region
    $region6: #{tpu_custom_call.1} parent=1 // pred_check
      _
    $region7: #{tpu_custom_call.1} parent=1 // pred_check_branch
      %23 = sbr.rel (0) target = $region9
    $region8: #{tpu_custom_call.1} parent=1 // pred_region
      _
    $region9: #{tpu_custom_call.1} parent=1 // pred_fallthru
      _
    // Predicated region
    $region10: #{tpu_custom_call.1} parent=1 // pred_check
      _
    $region11: #{tpu_custom_call.1} parent=1 // pred_check_branch
      %25 = sbr.rel (0) target = $region13
    $region12: #{tpu_custom_call.1} parent=1 // pred_region
      _
    $region13: #{tpu_custom_call.1} parent=1 // pred_fallthru
      _
    // Predicated region
    $region14: #{tpu_custom_call.1} parent=1 // pred_check
      _
    $region15: #{tpu_custom_call.1} parent=1 // pred_check_branch
      %27 = sbr.rel (0) target = $region17
    $region16: #{tpu_custom_call.1} parent=1 // pred_region
      %28 = dma.done [#allocation3], 768
    $region17: #{tpu_custom_call.1} parent=1 // pred_fallthru
      _
    %v29 = vld [vmem:[#allocation2] sm:$0xff]
    %v30 = vld [vmem:[#allocation2 + $0x8] sm:$0xf]
    %v31 = vld [vmem:[#allocation2 + $0xc] sm:$0xff]
    %v32 = vld [vmem:[#allocation2 + $0x14] sm:$0xf]
    %v33 = vld [vmem:[#allocation2 + $0x18] sm:$0xff]
    %v34 = vld [vmem:[#allocation2 + $0x20] sm:$0xf]
    %v35 = vld [vmem:[#allocation2 + $0x24] sm:$0xff]
    %v36 = vld [vmem:[#allocation2 + $0x2c] sm:$0xf]
    %v37 = vld [vmem:[%s1] sm:$0xff]
    %v38 = vld [vmem:[%s2] sm:$0x3f]
    %40 = vset.pattern.permute.xlu0 0
    %41 = vperm.xlu0 %40, %v37
    %v42 = vpop.permute.xlu0 %41
    %v45 = vlaneseq
    %v46 = vshrl.u32 %v45, 7
    %v47 = vsub.s32 0, %v46
    %v48 = vrot.slane %v38, %v47
    %v49 = vlaneseq
    %v50 = vshrl.u32 %v49, 7
    %v51 = vsub.s32 1, %v50
    %v52 = vrot.slane %v38, %v51
    %v53 = vlaneseq
    %v54 = vshrl.u32 %v53, 7
    %v55 = vsub.s32 2, %v54
    %v56 = vrot.slane %v38, %v55
    %v57 = vlaneseq
    %v58 = vshrl.u32 %v57, 7
    %v59 = vsub.s32 3, %v58
    %v60 = vrot.slane %v38, %v59
    %v61 = vlaneseq
    %v62 = vshrl.u32 %v61, 7
    %v63 = vsub.s32 4, %v62
    %v64 = vrot.slane %v38, %v63
    %v65 = vlaneseq
    %v66 = vshrl.u32 %v65, 7
    %v67 = vsub.s32 5, %v66
    %v68 = vrot.slane %v38, %v67
    %v75 = vmul.f32 %v42, %v48
    %v76 = vmul.f32 %v42, %v52
    %v77 = vmul.f32 %v42, %v56
    %v78 = vmul.f32 %v42, %v60
    %v79 = vmul.f32 %v42, %v64
    %v80 = vmul.f32 %v42, %v68
    %v87 = vcombine.low %v75, %v76
    %v88 = vcombine.high %v75, %v76
    %v89 = vcombine.low %v77, %v78
    %v90 = vcombine.high %v77, %v78
    %v92 = vunpack.c.l.s4 1983009808
    %v93 = vunpack.c.0.s8 %v92
    %v94 = vlaneseq
    %v95 = vshrl.u32 %v94, 7
    %v96 = vsub.s32 %v93, %v95
    %v97 = vrot.slane %v87, %v96
    %v99 = vunpack.c.l.s4 1983009808
    %v100 = vunpack.c.0.s8 %v99
    %v101 = vlaneseq
    %v102 = vshrl.u32 %v101, 7
    %v103 = vsub.s32 %v100, %v102
    %v104 = vrot.slane %v88, %v103
    %v106 = vunpack.c.l.s4 1983009808
    %v107 = vunpack.c.0.s8 %v106
    %v108 = vlaneseq
    %v109 = vshrl.u32 %v108, 7
    %v110 = vsub.s32 %v107, %v109
    %v111 = vrot.slane %v89, %v110
    %v113 = vunpack.c.l.s4 1983009808
    %v114 = vunpack.c.0.s8 %v113
    %v115 = vlaneseq
    %v116 = vshrl.u32 %v115, 7
    %v117 = vsub.s32 %v114, %v116
    %v118 = vrot.slane %v90, %v117
    %v119 = vcombine.low %v97, %v111
    %v120 = vcombine.high %v97, %v111
    %v121 = vcombine.low %v104, %v118
    %v122 = vcombine.high %v104, %v118
    %v123 = vcombine.low %v79, %v80
    %v124 = vcombine.high %v79, %v80
    %v126 = vunpack.c.l.s4 1983009808
    %v127 = vunpack.c.0.s8 %v126
    %v128 = vlaneseq
    %v129 = vshrl.u32 %v128, 7
    %v130 = vsub.s32 %v127, %v129
    %v131 = vrot.slane %v123, %v130
    %v133 = vunpack.c.l.s4 1983009808
    %v134 = vunpack.c.0.s8 %v133
    %v135 = vlaneseq
    %v136 = vshrl.u32 %v135, 7
    %v137 = vsub.s32 %v134, %v136
    %v138 = vrot.slane %v124, %v137
    %v139 = vcombine.high %v131, %v131
    %v140 = vcombine.high %v138, %v138
    %v149 = vadd.f32 %v29, %v119
    %v150 = vadd.f32 %v30, %v131
    %v151 = vadd.f32 %v31, %v120
    %v152 = vadd.f32 %v32, %v139
    %v153 = vadd.f32 %v33, %v121
    %v154 = vadd.f32 %v34, %v138
    %v155 = vadd.f32 %v35, %v122
    %v156 = vadd.f32 %v36, %v140
    %157 = vst [vmem:[#allocation5] sm:$0xff] %v149
    %158 = vst [vmem:[#allocation5 + $0x8] sm:$0xf] %v150
    %159 = vst [vmem:[#allocation5 + $0xc] sm:$0xff] %v151
    %160 = vst [vmem:[#allocation5 + $0x14] sm:$0xf] %v152
    %161 = vst [vmem:[#allocation5 + $0x18] sm:$0xff] %v153
    %162 = vst [vmem:[#allocation5 + $0x20] sm:$0xf] %v154
    %163 = vst [vmem:[#allocation5 + $0x24] sm:$0xff] %v155
    %164 = vst [vmem:[#allocation5 + $0x2c] sm:$0xf] %v156
    // Predicated region
    $region18: #{tpu_custom_call.1} parent=1 // pred_check
      _
    $region19: #{tpu_custom_call.1} parent=1 // pred_check_branch
      %166 = sbr.rel (0) target = $region21
    $region20: #{tpu_custom_call.1} parent=1 // pred_region
      %s168 = ssub.s32 768, 192
      %169 = vsyncadd [#allocation4], %s168
      %s170 = sshll.u32 [#allocation5], 4
      %s171 = int_to_ptr.vmem [resolvable:$true] %s170
      %176 = dma.vmem_to_hbm [thread:$0]  %s171, 192, %s3, [#allocation4], 192, 192, 12
    $region21: #{tpu_custom_call.1} parent=1 // pred_fallthru
      _
    // Predicated region
    $region22: #{tpu_custom_call.1} parent=1 // pred_check
      _
    $region23: #{tpu_custom_call.1} parent=1 // pred_check_branch
      %178 = sbr.rel (0) target = $region25
    $region24: #{tpu_custom_call.1} parent=1 // pred_region
      %179 = dma.done [#allocation4], 768
    $region25: #{tpu_custom_call.1} parent=1 // pred_fallthru
      _
    %180 = vsyncpa [#allocation3], 1
    %181 = vsyncpa [#allocation4], 1

// kernel: tpu_custom_call.1
$region0: #{tpu_custom_call.1}
  #allocation0 [shape = 'u32[]', space=smem, size = 0x4, offset = 0x4, fixed_abs, tag = 'smem constant byte address 0x4 - core index']
  #allocation1 [shape = 'u32[144,128]{1,0:T(1,128)}', space=vmem, size = 0x12000, scoped, tag = 'internal scratch']
  %s0 = inlined_call_operand.hbm [shape: f32[2,768], index: 0, kind: input, shape index: {}]
  %s1 = inlined_call_operand.vmem [shape: f32[2,1], index: 1, kind: input, shape index: {}]
  %s2 = inlined_call_operand.vmem [shape: f32[1,768], index: 2, kind: input, shape index: {}]
  %s3 = inlined_call_operand.hbm [shape: f32[2,768], index: 3, kind: output, shape index: {}]
  %s4 = sld [smem:[#allocation0]]
  $region26: #{tpu_custom_call.1} parent=0
    _
  %s6 = ssub.s32 1, %s4
  %s7 = scalar_select 0, %s6, %s4
  $region1: #{tpu_custom_call.1} parent=0
    #allocation2 [shape = 'u8[24576]{0}', space=vmem, size = 0x6000, scoped, tag = 'input window, operand 0, single buffered']
    #allocation3 [shape = 's32[1]{0}', space=sflag, size = 0x4, scoped, tag = 'scoped memory for tpu_custom_call.1']
    #allocation4 [shape = 's32[1]{0}', space=sflag, size = 0x4, scoped, tag = 'scoped memory for tpu_custom_call.1']
    #allocation5 [shape = 'u8[24576]{0}', space=vmem, size = 0x6000, scoped, tag = 'output window, operand 0, single buffered']
    %8 = vsyncpa [#allocation3], 0
    %9 = vsyncpa [#allocation4], 0
    // Predicated region
    $region2: #{tpu_custom_call.1} parent=1 // pred_check
      _
    $region3: #{tpu_custom_call.1} parent=1 // pred_check_branch
      %11 = sbr.rel (0) target = $region5
    $region4: #{tpu_custom_call.1} parent=1 // pred_region
      %s13 = ssub.s32 768, 192
      %14 = vsyncadd [#allocation3], %s13
      %s15 = sshll.u32 [#allocation2], 4
      %s16 = int_to_ptr.vmem [resolvable:$true] %s15
      %21 = dma.hbm_to_vmem [thread:$0]  %s0, 192, %s16, [#allocation3], 192, 192, 12
    $region5: #{tpu_custom_call.1} parent=1 // pred_fallthru
      _
    // Predicated region
    $region6: #{tpu_custom_call.1} parent=1 // pred_check
      _
    $region7: #{tpu_custom_call.1} parent=1 // pred_check_branch
      %23 = sbr.rel (0) target = $region9
    $region8: #{tpu_custom_call.1} parent=1 // pred_region
      _
    $region9: #{tpu_custom_call.1} parent=1 // pred_fallthru
      _
    // Predicated region
    $region10: #{tpu_custom_call.1} parent=1 // pred_check
      _
    $region11: #{tpu_custom_call.1} parent=1 // pred_check_branch
      %25 = sbr.rel (0) target = $region13
    $region12: #{tpu_custom_call.1} parent=1 // pred_region
      _
    $region13: #{tpu_custom_call.1} parent=1 // pred_fallthru
      _
    // Predicated region
    $region14: #{tpu_custom_call.1} parent=1 // pred_check
      _
    $region15: #{tpu_custom_call.1} parent=1 // pred_check_branch
      %27 = sbr.rel (0) target = $region17
    $region16: #{tpu_custom_call.1} parent=1 // pred_region
      %28 = dma.done [#allocation3], 768
    $region17: #{tpu_custom_call.1} parent=1 // pred_fallthru
      _
    %v29 = vld [vmem:[#allocation2] sm:$0xff]
    %v30 = vld [vmem:[#allocation2 + $0x8] sm:$0xf]
    %v31 = vld [vmem:[#allocation2 + $0xc] sm:$0xff]
    %v32 = vld [vmem:[#allocation2 + $0x14] sm:$0xf]
    %v33 = vld [vmem:[#allocation2 + $0x18] sm:$0xff]
    %v34 = vld [vmem:[#allocation2 + $0x20] sm:$0xf]
    %v35 = vld [vmem:[#allocation2 + $0x24] sm:$0xff]
    %v36 = vld [vmem:[#allocation2 + $0x2c] sm:$0xf]
    %v37 = vld [vmem:[%s1] sm:$0xff]
    %v38 = vld [vmem:[%s2] sm:$0x3f]
    %40 = vset.pattern.permute.xlu0 0
    %41 = vperm.xlu0 %40, %v37
    %v42 = vpop.permute.xlu0 %41
    %v45 = vlaneseq
    %v46 = vshrl.u32 %v45, 7
    %v47 = vsub.s32 0, %v46
    %v48 = vrot.slane %v38, %v47
    %v49 = vlaneseq
    %v50 = vshrl.u32 %v49, 7
    %v51 = vsub.s32 1, %v50
    %v52 = vrot.slane %v38, %v51
    %v53 = vlaneseq
    %v54 = vshrl.u32 %v53, 7
    %v55 = vsub.s32 2, %v54
    %v56 = vrot.slane %v38, %v55
    %v57 = vlaneseq
    %v58 = vshrl.u32 %v57, 7
    %v59 = vsub.s32 3, %v58
    %v60 = vrot.slane %v38, %v59
    %v61 = vlaneseq
    %v62 = vshrl.u32 %v61, 7
    %v63 = vsub.s32 4, %v62
    %v64 = vrot.slane %v38, %v63
    %v65 = vlaneseq
    %v66 = vshrl.u32 %v65, 7
    %v67 = vsub.s32 5, %v66
    %v68 = vrot.slane %v38, %v67
    %v75 = vmul.f32 %v42, %v48
    %v76 = vmul.f32 %v42, %v52
    %v77 = vmul.f32 %v42, %v56
    %v78 = vmul.f32 %v42, %v60
    %v79 = vmul.f32 %v42, %v64
    %v80 = vmul.f32 %v42, %v68
    %v87 = vcombine.low %v75, %v76
    %v88 = vcombine.high %v75, %v76
    %v89 = vcombine.low %v77, %v78
    %v90 = vcombine.high %v77, %v78
    %v92 = vunpack.c.l.s4 1983009808
    %v93 = vunpack.c.0.s8 %v92
    %v94 = vlaneseq
    %v95 = vshrl.u32 %v94, 7
    %v96 = vsub.s32 %v93, %v95
    %v97 = vrot.slane %v87, %v96
    %v99 = vunpack.c.l.s4 1983009808
    %v100 = vunpack.c.0.s8 %v99
    %v101 = vlaneseq
    %v102 = vshrl.u32 %v101, 7
    %v103 = vsub.s32 %v100, %v102
    %v104 = vrot.slane %v88, %v103
    %v106 = vunpack.c.l.s4 1983009808
    %v107 = vunpack.c.0.s8 %v106
    %v108 = vlaneseq
    %v109 = vshrl.u32 %v108, 7
    %v110 = vsub.s32 %v107, %v109
    %v111 = vrot.slane %v89, %v110
    %v113 = vunpack.c.l.s4 1983009808
    %v114 = vunpack.c.0.s8 %v113
    %v115 = vlaneseq
    %v116 = vshrl.u32 %v115, 7
    %v117 = vsub.s32 %v114, %v116
    %v118 = vrot.slane %v90, %v117
    %v119 = vcombine.low %v97, %v111
    %v120 = vcombine.high %v97, %v111
    %v121 = vcombine.low %v104, %v118
    %v122 = vcombine.high %v104, %v118
    %v123 = vcombine.low %v79, %v80
    %v124 = vcombine.high %v79, %v80
    %v126 = vunpack.c.l.s4 1983009808
    %v127 = vunpack.c.0.s8 %v126
    %v128 = vlaneseq
    %v129 = vshrl.u32 %v128, 7
    %v130 = vsub.s32 %v127, %v129
    %v131 = vrot.slane %v123, %v130
    %v133 = vunpack.c.l.s4 1983009808
    %v134 = vunpack.c.0.s8 %v133
    %v135 = vlaneseq
    %v136 = vshrl.u32 %v135, 7
    %v137 = vsub.s32 %v134, %v136
    %v138 = vrot.slane %v124, %v137
    %v139 = vcombine.high %v131, %v131
    %v140 = vcombine.high %v138, %v138
    %v149 = vadd.f32 %v29, %v119
    %v150 = vadd.f32 %v30, %v131
    %v151 = vadd.f32 %v31, %v120
    %v152 = vadd.f32 %v32, %v139
    %v153 = vadd.f32 %v33, %v121
    %v154 = vadd.f32 %v34, %v138
    %v155 = vadd.f32 %v35, %v122
    %v156 = vadd.f32 %v36, %v140
    %157 = vst [vmem:[#allocation5] sm:$0xff] %v149
    %158 = vst [vmem:[#allocation5 + $0x8] sm:$0xf] %v150
    %159 = vst [vmem:[#allocation5 + $0xc] sm:$0xff] %v151
    %160 = vst [vmem:[#allocation5 + $0x14] sm:$0xf] %v152
    %161 = vst [vmem:[#allocation5 + $0x18] sm:$0xff] %v153
    %162 = vst [vmem:[#allocation5 + $0x20] sm:$0xf] %v154
    %163 = vst [vmem:[#allocation5 + $0x24] sm:$0xff] %v155
    %164 = vst [vmem:[#allocation5 + $0x2c] sm:$0xf] %v156
    // Predicated region
    $region18: #{tpu_custom_call.1} parent=1 // pred_check
      _
    $region19: #{tpu_custom_call.1} parent=1 // pred_check_branch
      %166 = sbr.rel (0) target = $region21
    $region20: #{tpu_custom_call.1} parent=1 // pred_region
      %s168 = ssub.s32 768, 192
      %169 = vsyncadd [#allocation4], %s168
      %s170 = sshll.u32 [#allocation5], 4
      %s171 = int_to_ptr.vmem [resolvable:$true] %s170
      %176 = dma.vmem_to_hbm [thread:$0]  %s171, 192, %s3, [#allocation4], 192, 192, 12
    $region21: #{tpu_custom_call.1} parent=1 // pred_fallthru
      _
    // Predicated region
    $region22: #{tpu_custom_call.1} parent=1 // pred_check
      _
    $region23: #{tpu_custom_call.1} parent=1 // pred_check_branch
      %178 = sbr.rel (0) target = $region25
    $region24: #{tpu_custom_call.1} parent=1 // pred_region
      %179 = dma.done [#allocation4], 768
    $region25: #{tpu_custom_call.1} parent=1 // pred_fallthru
      _
    %180 = vsyncpa [#allocation3], 1
    %181 = vsyncpa [#allocation4], 1

</llo_original>
